<compile_context>
chip_gen: v7x
topology: tpu7x:2x2x1
jax: 0.10.0
libtpu: 0.0.40
codegen_flags: <defaults>
</compile_context>

<pallas_src>
import functools

import jax
import jax.numpy as jnp
from jax import lax
from jax.experimental import pallas as pl
from jax.experimental.pallas import tpu as pltpu


_SQRT_HALF = 0.7071067811865476
_MIB = 1024 * 1024


def _round_up(x, m):
    return (x + m - 1) // m * m


def _cdiv(a, b):
    return (a + b - 1) // b


def _gelu(h, approximate):
    if approximate:
        # tanh GELU runs on the EUP slot (cheaper on v6e/v7x) but differs from
        # torch.nn.GELU() default numerics by ~1e-3 relative.
        return jax.nn.gelu(h, approximate=True)
    # Exact erf GELU (matches torch.nn.GELU() default).
    return 0.5 * h * (1.0 + lax.erf(h * jnp.float32(_SQRT_HALF)))


def _tpu_vmem_capacity_bytes():
    """Per-core VMEM capacity; falls back to 128 MiB if the query fails."""
    try:
        info = pltpu.get_tpu_info()
        cap = int(getattr(info, "vmem_capacity_bytes", 0))
        if cap > 0:
            return cap
    except Exception:
        pass
    return 128 * _MIB


def _ffn_kernel_single(x_ref, w1_ref, b1_ref, w2_ref, b2_ref, o_ref,
                       *, approximate_gelu):
    # Full intermediate dim in one step: no scratch accumulator; weight blocks
    # are index-invariant so they are DMA'd into VMEM once for the whole call.
    h = jnp.dot(x_ref[...], w1_ref[...], preferred_element_type=jnp.float32)
    h = _gelu(h + b1_ref[...], approximate_gelu)
    out = jnp.dot(h.astype(w2_ref.dtype), w2_ref[...],
                  preferred_element_type=jnp.float32)
    # TODO(synk): dropout is identity in eval mode; training-mode dropout would
    # need pltpu.prng_seed / pltpu.stateful_bernoulli here.
    o_ref[...] = (out + b2_ref[...]).astype(o_ref.dtype)


def _ffn_kernel_chunked(x_ref, w1_ref, b1_ref, w2_ref, b2_ref, o_ref, acc_ref,
                        *, approximate_gelu):
    # I-chunked reduction, used only when full-I weights + h intermediate would
    # overflow the per-chip VMEM budget (e.g. BERT-large class shapes on v7x).
    j = pl.program_id(1)

    @pl.when(j == 0)
    def _():
        # Fold the output bias into the accumulator init: removes a full
        # (tm, H) f32 add from the finalize step.
        acc_ref[...] = jnp.broadcast_to(
            b2_ref[...].astype(jnp.float32), acc_ref.shape)

    h = jnp.dot(x_ref[...], w1_ref[...], preferred_element_type=jnp.float32)
    h = _gelu(h + b1_ref[...], approximate_gelu)
    acc_ref[...] += jnp.dot(h.astype(w2_ref.dtype), w2_ref[...],
                            preferred_element_type=jnp.float32)

    @pl.when(j == pl.num_programs(1) - 1)
    def _():
        o_ref[...] = acc_ref[...].astype(o_ref.dtype)


@functools.partial(jax.jit, static_argnames=("tm", "approximate_gelu"))
def feed_forward(x, w1, b1, w2, b2, *, tm=1024, approximate_gelu=False):
    """x: (batch, seq, hidden). Returns (batch, seq, hidden)."""
    B, S, H = x.shape
    H_in, I = w1.shape
    assert H_in == H
    M = B * S

    elt_x = jnp.dtype(x.dtype).itemsize
    elt_w = jnp.dtype(w1.dtype).itemsize

    # dtype-native sublane multiple for the row tile (f32: 8, bf16: 16, 8b: 32)
    row_align = {4: 8, 2: 16, 1: 32}.get(elt_x, 8)

    vmem_cap = _tpu_vmem_capacity_bytes()
    two_core = vmem_cap <= 64 * _MIB  # v7x-class: 2 TCs/chip, 64 MiB VMEM/TC
    budget = 48 * _MIB if two_core else 96 * _MIB

    # --- Row tiling: balanced tiles so ragged M pads by < one alignment unit.
    grid_i = max(1, _cdiv(M, tm))
    tm_eff = _round_up(_cdiv(M, grid_i), row_align)
    if two_core and _cdiv(M, tm_eff) < 2 and M > row_align:
        # Guarantee >= 2 steps on the "parallel" axis so both TCs get work.
        tm_eff = _round_up(_cdiv(M, 2), row_align)
    grid_i = _cdiv(M, tm_eff)
    M_pad = grid_i * tm_eff

    # --- Intermediate tiling: full-I single step if VMEM allows, else chunk.
    def single_step_bytes(ti):
        return (2 * tm_eff * H * elt_x            # x blocks (double-buffered)
                + 2 * tm_eff * H * elt_x          # out blocks
                + 2 * (H * ti + ti) * elt_w       # W1 + b1
                + 2 * (ti * H + H) * elt_w        # W2 + b2
                + 2 * tm_eff * ti * 4)            # f32 h intermediate + temps

    def chunked_bytes(ti):
        return (2 * tm_eff * H * elt_x
                + 2 * tm_eff * H * elt_x
                + 2 * (H * ti + ti) * elt_w
                + 2 * (ti * H + H) * elt_w
                + tm_eff * H * 4                  # f32 accumulator scratch
                + 2 * tm_eff * ti * 4)

    if single_step_bytes(I) <= budget:
        single_step = True
        ti_eff, I_pad = I, I
        vmem_need = single_step_bytes(I)
    else:
        single_step = False
        ti_eff = 128
        for cand in (2048, 1536, 1024, 768, 512, 384, 256, 128):
            if cand > I:
                continue
            n_chunks = _cdiv(I, cand)
            t = _round_up(_cdiv(I, n_chunks), 128)
            if chunked_bytes(t) <= budget:
                ti_eff = t
                break
        I_pad = _cdiv(I, ti_eff) * ti_eff
        vmem_need = chunked_bytes(ti_eff)

    # --- Pad inputs (zero-padding is numerically exact: GELU(0)=0 through
    # zero rows of W2; padded M rows are sliced off afterwards).
    x2d = x.reshape(M, H)
    if M_pad != M:
        x2d = jnp.pad(x2d, ((0, M_pad - M), (0, 0)))
    if I_pad != I:
        w1 = jnp.pad(w1, ((0, 0), (0, I_pad - I)))
        b1 = jnp.pad(b1, ((0, I_pad - I),))
        w2 = jnp.pad(w2, ((0, I_pad - I), (0, 0)))
    b1_2d = b1.reshape(1, I_pad)
    b2_2d = b2.reshape(1, H)

    # VMEM limit: leave headroom for Mosaic internal scratch on v7x; allow
    # > 64 MiB on v5e/v6e (physical 128 MiB) so the big tiles are usable.
    vmem_cap_limit = 52 * _MIB if two_core else 100 * _MIB
    vmem_limit = int(min(max(int(vmem_need * 1.25), 32 * _MIB), vmem_cap_limit))

    weight_stream_factor = 1 if single_step else grid_i
    cost = pl.CostEstimate(
        flops=4 * M_pad * H * I_pad,              # two matmuls
        transcendentals=M_pad * I_pad,            # erf / tanh
        bytes_accessed=(
            M_pad * H * elt_x                                  # x read
            + M_pad * H * elt_x                                # out write
            + weight_stream_factor * (H * I_pad + I_pad * H) * elt_w  # W1, W2
            + weight_stream_factor * (I_pad + H) * elt_w       # b1, b2
        ),
    )

    if single_step:
        grid = (grid_i,)
        kernel = functools.partial(_ffn_kernel_single,
                                   approximate_gelu=approximate_gelu)
        in_specs = [
            pl.BlockSpec((tm_eff, H), lambda i: (i, 0)),   # x rows
            pl.BlockSpec((H, I_pad), lambda i: (0, 0)),    # W1 (resident)
            pl.BlockSpec((1, I_pad), lambda i: (0, 0)),    # b1
            pl.BlockSpec((I_pad, H), lambda i: (0, 0)),    # W2 (resident)
            pl.BlockSpec((1, H), lambda i: (0, 0)),        # b2
        ]
        out_specs = pl.BlockSpec((tm_eff, H), lambda i: (i, 0))
        scratch_shapes = []
        dim_sem = ("parallel",)
    else:
        grid = (grid_i, I_pad // ti_eff)
        kernel = functools.partial(_ffn_kernel_chunked,
                                   approximate_gelu=approximate_gelu)
        in_specs = [
            pl.BlockSpec((tm_eff, H), lambda i, j: (i, 0)),   # x rows
            pl.BlockSpec((H, ti_eff), lambda i, j: (0, j)),   # W1 chunk
            pl.BlockSpec((1, ti_eff), lambda i, j: (0, j)),   # b1 chunk
            pl.BlockSpec((ti_eff, H), lambda i, j: (j, 0)),   # W2 chunk
            pl.BlockSpec((1, H), lambda i, j: (0, 0)),        # b2
        ]
        out_specs = pl.BlockSpec((tm_eff, H), lambda i, j: (i, 0))
        scratch_shapes = [pltpu.VMEM((tm_eff, H), jnp.float32)]
        dim_sem = ("parallel", "arbitrary")

    out2d = pl.pallas_call(
        kernel,
        out_shape=jax.ShapeDtypeStruct((M_pad, H), x.dtype),
        grid_spec=pltpu.PrefetchScalarGridSpec(
            num_scalar_prefetch=0,
            grid=grid,
            in_specs=in_specs,
            out_specs=out_specs,
            scratch_shapes=scratch_shapes,
        ),
        compiler_params=pltpu.CompilerParams(
            dimension_semantics=dim_sem,
            vmem_limit_bytes=vmem_limit,
        ),
        cost_estimate=cost,
    )(x2d, w1, b1_2d, w2, b2_2d)

    return out2d[:M].reshape(B, S, H)


def _reference(x, w1, b1, w2, b2):
    h = x @ w1 + b1
    h = 0.5 * h * (1.0 + lax.erf(h * jnp.float32(_SQRT_HALF)))
    return h @ w2 + b2


if __name__ == "__main__":
    # Small, module-consistent shapes (BERT-style): hidden=32, intermediate=128
    batch, seq, hidden, intermediate = 2, 8, 32, 128

    key = jax.random.PRNGKey(0)
    kx, kw1, kb1, kw2, kb2 = jax.random.split(key, 5)

    x = jax.random.normal(kx, (batch, seq, hidden), dtype=jnp.float32)

    # Deterministic parameter init (stored transposed vs. torch: (in, out))
    bound1 = 1.0 / jnp.sqrt(hidden)
    w1 = jax.random.uniform(kw1, (hidden, intermediate), jnp.float32, -bound1, bound1)
    b1 = jax.random.uniform(kb1, (intermediate,), jnp.float32, -bound1, bound1)
    bound2 = 1.0 / jnp.sqrt(intermediate)
    w2 = jax.random.uniform(kw2, (intermediate, hidden), jnp.float32, -bound2, bound2)
    b2 = jax.random.uniform(kb2, (hidden,), jnp.float32, -bound2, bound2)

    out = feed_forward(x, w1, b1, w2, b2)
    out = jax.block_until_ready(out)

    ref = _reference(x, w1, b1, w2, b2)
    assert out.shape == (batch, seq, hidden)
    assert jnp.allclose(out, ref, atol=1e-5, rtol=1e-5), "mismatch vs reference"

    print("KERNEL_OK")
</pallas_src>

<mosaic_0001>
module attributes {stable_mosaic.version = 11 : i64} {
  func.func @_ffn_kernel_single(%arg0: i32, %arg1: memref<16x32xf32, #tpu.memory_space<vmem>>, %arg2: memref<32x128xf32, #tpu.memory_space<vmem>>, %arg3: memref<1x128xf32, #tpu.memory_space<vmem>>, %arg4: memref<128x32xf32, #tpu.memory_space<vmem>>, %arg5: memref<1x32xf32, #tpu.memory_space<vmem>>, %arg6: memref<16x32xf32, #tpu.memory_space<vmem>>) attributes {dimension_semantics = [#tpu.dimension_semantics<parallel>], iteration_bounds = array<i64: 1>, scalar_prefetch = 0 : i64, scratch_operands = 0 : i64, tpu.core_type = #tpu.core_type<tc>, window_params = [{transform_indices = @transform_0, window_bounds = array<i64: 16, 32>}, {pipeline_mode = #tpu.pipeline_mode<synchronous>, transform_indices = @transform_1, window_bounds = array<i64: 32, 128>}, {pipeline_mode = #tpu.pipeline_mode<synchronous>, transform_indices = @transform_2, window_bounds = array<i64: 1, 128>}, {pipeline_mode = #tpu.pipeline_mode<synchronous>, transform_indices = @transform_3, window_bounds = array<i64: 128, 32>}, {pipeline_mode = #tpu.pipeline_mode<synchronous>, transform_indices = @transform_4, window_bounds = array<i64: 1, 32>}, {transform_indices = @transform_5, window_bounds = array<i64: 16, 32>}]} {
    %c0 = arith.constant 0 : index
    %c0_0 = arith.constant 0 : index
    %0 = vector.load %arg1[%c0, %c0_0] : memref<16x32xf32, #tpu.memory_space<vmem>>, vector<16x32xf32>
    %c0_1 = arith.constant 0 : index
    %c0_2 = arith.constant 0 : index
    %1 = vector.load %arg2[%c0_1, %c0_2] : memref<32x128xf32, #tpu.memory_space<vmem>>, vector<32x128xf32>
    %cst = arith.constant dense<0.000000e+00> : vector<16x128xf32>
    %2 = tpu.matmul %0, %1, %cst {dimension_numbers = #tpu.dot_dimension_numbers<[1], [0], [0], [1], [0, 0, 1, 1], [], []>} : vector<16x32xf32>, vector<32x128xf32>, vector<16x128xf32> -> vector<16x128xf32>
    %c0_3 = arith.constant 0 : index
    %c0_4 = arith.constant 0 : index
    %3 = vector.load %arg3[%c0_3, %c0_4] : memref<1x128xf32, #tpu.memory_space<vmem>>, vector<1x128xf32>
    %4 = vector.broadcast %3 : vector<1x128xf32> to vector<16x128xf32>
    %5 = arith.addf %2, %4 : vector<16x128xf32>
    %cst_5 = arith.constant 5.000000e-01 : f32
    %6 = vector.broadcast %cst_5 : f32 to vector<16x128xf32>
    %7 = arith.mulf %6, %5 : vector<16x128xf32>
    %cst_6 = arith.constant 0.707106769 : f32
    %8 = vector.broadcast %cst_6 : f32 to vector<16x128xf32>
    %9 = arith.mulf %5, %8 : vector<16x128xf32>
    %10 = math.erf %9 : vector<16x128xf32>
    %cst_7 = arith.constant 1.000000e+00 : f32
    %11 = vector.broadcast %cst_7 : f32 to vector<16x128xf32>
    %12 = arith.addf %11, %10 : vector<16x128xf32>
    %13 = arith.mulf %7, %12 : vector<16x128xf32>
    %c0_8 = arith.constant 0 : index
    %c0_9 = arith.constant 0 : index
    %14 = vector.load %arg4[%c0_8, %c0_9] : memref<128x32xf32, #tpu.memory_space<vmem>>, vector<128x32xf32>
    %cst_10 = arith.constant dense<0.000000e+00> : vector<16x32xf32>
    %15 = tpu.matmul %13, %14, %cst_10 {dimension_numbers = #tpu.dot_dimension_numbers<[1], [0], [0], [1], [0, 0, 1, 1], [], []>} : vector<16x128xf32>, vector<128x32xf32>, vector<16x32xf32> -> vector<16x32xf32>
    %c0_11 = arith.constant 0 : index
    %c0_12 = arith.constant 0 : index
    %16 = vector.load %arg5[%c0_11, %c0_12] : memref<1x32xf32, #tpu.memory_space<vmem>>, vector<1x32xf32>
    %17 = vector.broadcast %16 : vector<1x32xf32> to vector<16x32xf32>
    %18 = arith.addf %15, %17 : vector<16x32xf32>
    %c0_13 = arith.constant 0 : index
    %c0_14 = arith.constant 0 : index
    %19 = vector.load %arg6[%c0_13, %c0_14] : memref<16x32xf32, #tpu.memory_space<vmem>>, vector<16x32xf32>
    tpu.vector_store %arg6[%c0_13, %c0_14], %18 {strides = array<i32>} : memref<16x32xf32, #tpu.memory_space<vmem>>, vector<16x32xf32>,
    return
  }
  func.func @transform_0(%arg0: i32) -> (i32, i32) {
    %c0_i32 = arith.constant 0 : i32
    %c0_i32_0 = arith.constant 0 : i32
    return %arg0, %c0_i32 : i32, i32
  }
  func.func @transform_1(%arg0: i32) -> (i32, i32) {
    %c0_i32 = arith.constant 0 : i32
    %c0_i32_0 = arith.constant 0 : i32
    %c0_i32_1 = arith.constant 0 : i32
    return %c0_i32, %c0_i32_0 : i32, i32
  }
  func.func @transform_2(%arg0: i32) -> (i32, i32) {
    %c0_i32 = arith.constant 0 : i32
    %c0_i32_0 = arith.constant 0 : i32
    %c0_i32_1 = arith.constant 0 : i32
    return %c0_i32, %c0_i32_0 : i32, i32
  }
  func.func @transform_3(%arg0: i32) -> (i32, i32) {
    %c0_i32 = arith.constant 0 : i32
    %c0_i32_0 = arith.constant 0 : i32
    %c0_i32_1 = arith.constant 0 : i32
    return %c0_i32, %c0_i32_0 : i32, i32
  }
  func.func @transform_4(%arg0: i32) -> (i32, i32) {
    %c0_i32 = arith.constant 0 : i32
    %c0_i32_0 = arith.constant 0 : i32
    %c0_i32_1 = arith.constant 0 : i32
    return %c0_i32, %c0_i32_0 : i32, i32
  }
  func.func @transform_5(%arg0: i32) -> (i32, i32) {
    %c0_i32 = arith.constant 0 : i32
    %c0_i32_0 = arith.constant 0 : i32
    return %arg0, %c0_i32 : i32, i32
  }
}

</mosaic_0001>

<llo_original>
// kernel: feed_forward.1
$region0: #{feed_forward.1}
  #allocation0 [shape = 'u32[]', space=smem, size = 0x4, offset = 0x4, fixed_abs, tag = 'smem constant byte address 0x4 - core index']
  #allocation1 [shape = 'u32[144,128]{1,0:T(1,128)}', space=vmem, size = 0x12000, scoped, tag = 'internal scratch']
  %s0 = inlined_call_operand.vmem [shape: f32[16,32], index: 0, kind: input, shape index: {}]
  %s1 = inlined_call_operand.vmem [shape: f32[32,128], index: 1, kind: input, shape index: {}]
  %s2 = inlined_call_operand.vmem [shape: f32[1,128], index: 2, kind: input, shape index: {}]
  %s3 = inlined_call_operand.vmem [shape: f32[128,32], index: 3, kind: input, shape index: {}]
  %s4 = inlined_call_operand.vmem [shape: f32[1,32], index: 4, kind: input, shape index: {}]
  %s5 = inlined_call_operand.hbm [shape: f32[16,32], index: 5, kind: output, shape index: {}]
  %s6 = sld [smem:[#allocation0]]
  $region30: #{feed_forward.1} parent=0
    _
  %s8 = ssub.s32 1, %s6
  %s9 = scalar_select 0, %s8, %s6
  $region1: #{feed_forward.1} parent=0
    #allocation2 [shape = 'u8[8192]{0}', space=vmem, size = 0x2000, scoped, tag = 'output window, operand 0, single buffered']
    #allocation3 [shape = 's32[1]{0}', space=sflag, size = 0x4, scoped, tag = 'scoped memory for feed_forward.1']
    %10 = vsyncpa [#allocation3], 0
    // Predicated region
    $region2: #{feed_forward.1} parent=1 // pred_check
      _
    $region3: #{feed_forward.1} parent=1 // pred_check_branch
      %12 = sbr.rel (0) target = $region5
    $region4: #{feed_forward.1} parent=1 // pred_region
      _
    $region5: #{feed_forward.1} parent=1 // pred_fallthru
      _
    // Predicated region
    $region6: #{feed_forward.1} parent=1 // pred_check
      _
    $region7: #{feed_forward.1} parent=1 // pred_check_branch
      %14 = sbr.rel (0) target = $region9
    $region8: #{feed_forward.1} parent=1 // pred_region
      _
    $region9: #{feed_forward.1} parent=1 // pred_fallthru
      _
    // Predicated region
    $region10: #{feed_forward.1} parent=1 // pred_check
      _
    $region11: #{feed_forward.1} parent=1 // pred_check_branch
      %16 = sbr.rel (0) target = $region13
    $region12: #{feed_forward.1} parent=1 // pred_region
      _
    $region13: #{feed_forward.1} parent=1 // pred_fallthru
      _
    // Predicated region
    $region14: #{feed_forward.1} parent=1 // pred_check
      _
    $region15: #{feed_forward.1} parent=1 // pred_check_branch
      %18 = sbr.rel (0) target = $region17
    $region16: #{feed_forward.1} parent=1 // pred_region
      _
    $region17: #{feed_forward.1} parent=1 // pred_fallthru
      _
    // Predicated region
    $region18: #{feed_forward.1} parent=1 // pred_check
      _
    $region19: #{feed_forward.1} parent=1 // pred_check_branch
      %20 = sbr.rel (0) target = $region21
    $region20: #{feed_forward.1} parent=1 // pred_region
      _
    $region21: #{feed_forward.1} parent=1 // pred_fallthru
      _
    %v21 = vld [vmem:[%s0] sm:$0xff]
    %v22 = vld [vmem:[%s0 + $0x8] sm:$0xff]
    %v23 = vld [vmem:[%s1] sm:$0xff]
    %v24 = vld [vmem:[%s1 + $0x8] sm:$0xff]
    %v25 = vld [vmem:[%s1 + $0x10] sm:$0xff]
    %v26 = vld [vmem:[%s1 + $0x18] sm:$0xff]
    %v27 = vld [vmem:[%s2] sm:$0x1]
    %v29 = vlaneseq
    %v30 = vshrl.u32 %v29, 7
    %v31 = vsub.s32 0, %v30
    %v32 = vrot.slane %v27, %v31
    %vm34 = vcmask 261120
    %v36 = vsel %vm34, %v21, 0
    %v39 = vsel %vm34, %v22, 0
    %41 = vmatprep.subr.mxu0 0.0
    %42 = vmatpush1.msra.mxu0 %v23
    %43 = vmatprep.subr.mxu0 0.0
    %44 = vmatpush1.msra.mxu0 %v24
    %45 = vmatprep.subr.mxu0 0.0
    %46 = vmatpush1.msra.mxu0 %v25
    %47 = vmatprep.subr.mxu0 0.0
    %48 = vmatpush1.msra.mxu0 %v26
    %49 = vmatprep.subr.mxu0 0.0
    %50 = vmatpush1.msra.mxu0 0.0
    %51 = vmatprep.subr.mxu0 0.0
    %52 = vmatpush1.msra.mxu0 0.0
    %53 = vmatprep.subr.mxu0 0.0
    %54 = vmatpush1.msra.mxu0 0.0
    %55 = vmatprep.subr.mxu0 0.0
    %56 = vmatpush1.msra.mxu0 0.0
    %57 = vmatprep.subr.mxu0 0.0
    %58 = vmatpush1.msra.mxu0 0.0
    %59 = vmatprep.subr.mxu0 0.0
    %60 = vmatpush1.msra.mxu0 0.0
    %61 = vmatprep.subr.mxu0 0.0
    %62 = vmatpush1.msra.mxu0 0.0
    %63 = vmatprep.subr.mxu0 0.0
    %64 = vmatpush1.msra.mxu0 0.0
    %65 = vmatprep.subr.mxu0 0.0
    %66 = vmatpush1.msra.mxu0 0.0
    %67 = vmatprep.subr.mxu0 0.0
    %68 = vmatpush1.msra.mxu0 0.0
    %69 = vmatprep.subr.mxu0 0.0
    %70 = vmatpush1.msra.mxu0 0.0
    %71 = vmatprep.subr.mxu0 0.0
    %72 = vmatpush1.msra.mxu0 0.0
    %73 = vmatprep.subr.mxu0 0.0
    %74 = vmatpush1.msra.mxu0 0.0
    %75 = vmatprep.subr.mxu0 0.0
    %76 = vmatpush1.msra.mxu0 0.0
    %77 = vmatprep.subr.mxu0 0.0
    %78 = vmatpush1.msra.mxu0 0.0
    %79 = vmatprep.subr.mxu0 0.0
    %80 = vmatpush1.msra.mxu0 0.0
    %81 = vmatprep.subr.mxu0 0.0
    %82 = vmatpush1.msra.mxu0 0.0
    %83 = vmatprep.subr.mxu0 0.0
    %84 = vmatpush1.msra.mxu0 0.0
    %85 = vmatprep.subr.mxu0 0.0
    %86 = vmatpush1.msra.mxu0 0.0
    %87 = vmatprep.subr.mxu0 0.0
    %88 = vmatpush1.msra.mxu0 0.0
    %89 = vmatprep.subr.mxu0 0.0
    %90 = vmatpush1.msra.mxu0 0.0
    %91 = vmatprep.subr.mxu0 0.0
    %92 = vmatpush1.msra.mxu0 0.0
    %93 = vmatprep.subr.mxu0 0.0
    %94 = vmatpush1.msra.mxu0 0.0
    %95 = vmatprep.subr.mxu0 0.0
    %96 = vmatpush1.msra.mxu0 0.0
    %97 = vmatprep.subr.mxu0 0.0
    %98 = vmatpush1.msra.mxu0 0.0
    %99 = vmatprep.subr.mxu0 0.0
    %100 = vmatpush1.msra.mxu0 0.0
    %101 = vmatprep.subr.mxu0 0.0
    %102 = vmatpush1.msra.mxu0 0.0
    %103 = vmatprep.subr.mxu0 0.0
    %104 = vmatpush1.msra.mxu0 0.0
    %105 = vmatprep.mubr.f32.mxu0 0.0
    %106 = vmatmul.mubr.f32.gmra.mrb[0].mxu0 %v36
    %v107 = vpop.f32.mrb[0].mxu0
    %v108 = vadd.f32 %v32, %v107
    %v109 = vpop.f32.mrb[0].mxu0
    %110 = vmatprep.mubr.f32.mxu0 0.0
    %111 = vmatmul.mubr.f32.gmra.mrb[0].mxu0 %v39
    %v112 = vpop.f32.mrb[0].mxu0
    %v113 = vadd.f32 %v32, %v112
    %v114 = vpop.f32.mrb[0].mxu0
    %115 = vdwg.mxu0
    %v116 = vmul.f32 %v108, 0.5
    %v117 = vmul.f32 %v113, 0.5
    %v118 = vmul.f32 %v108, 0.70710677
    %v119 = vmul.f32 %v113, 0.70710677
    %v120 = verf.f32.pop %v118
    %v121 = verf.f32.pop %v119
    %v122 = vadd.f32 %v120, 1.0
    %v123 = vadd.f32 %v121, 1.0
    %v124 = vmul.f32 %v116, %v122
    %v125 = vmul.f32 %v117, %v123
    %v126 = vld [vmem:[%s3] sm:$0xff]
    %v127 = vld [vmem:[%s3 + $0x8] sm:$0xff]
    %v128 = vld [vmem:[%s3 + $0x10] sm:$0xff]
    %v129 = vld [vmem:[%s3 + $0x18] sm:$0xff]
    %v130 = vld [vmem:[%s3 + $0x20] sm:$0xff]
    %v131 = vld [vmem:[%s3 + $0x28] sm:$0xff]
    %v132 = vld [vmem:[%s3 + $0x30] sm:$0xff]
    %v133 = vld [vmem:[%s3 + $0x38] sm:$0xff]
    %v134 = vld [vmem:[%s3 + $0x40] sm:$0xff]
    %v135 = vld [vmem:[%s3 + $0x48] sm:$0xff]
    %v136 = vld [vmem:[%s3 + $0x50] sm:$0xff]
    %v137 = vld [vmem:[%s3 + $0x58] sm:$0xff]
    %v138 = vld [vmem:[%s3 + $0x60] sm:$0xff]
    %v139 = vld [vmem:[%s3 + $0x68] sm:$0xff]
    %v140 = vld [vmem:[%s3 + $0x70] sm:$0xff]
    %v141 = vld [vmem:[%s3 + $0x78] sm:$0xff]
    %v142 = vld [vmem:[%s4] sm:$0x1]
    %v144 = vlaneseq
    %v145 = vshrl.u32 %v144, 7
    %v146 = vsub.s32 0, %v145
    %v147 = vrot.slane %v142, %v146
    %149 = vmatprep.subr.mxu0 0.0
    %150 = vmatpush1.msra.mxu0 %v126
    %151 = vmatprep.subr.mxu0 0.0
    %152 = vmatpush1.msra.mxu0 %v127
    %153 = vmatprep.subr.mxu0 0.0
    %154 = vmatpush1.msra.mxu0 %v128
    %155 = vmatprep.subr.mxu0 0.0
    %156 = vmatpush1.msra.mxu0 %v129
    %157 = vmatprep.subr.mxu0 0.0
    %158 = vmatpush1.msra.mxu0 %v130
    %159 = vmatprep.subr.mxu0 0.0
    %160 = vmatpush1.msra.mxu0 %v131
    %161 = vmatprep.subr.mxu0 0.0
    %162 = vmatpush1.msra.mxu0 %v132
    %163 = vmatprep.subr.mxu0 0.0
    %164 = vmatpush1.msra.mxu0 %v133
    %165 = vmatprep.subr.mxu0 0.0
    %166 = vmatpush1.msra.mxu0 %v134
    %167 = vmatprep.subr.mxu0 0.0
    %168 = vmatpush1.msra.mxu0 %v135
    %169 = vmatprep.subr.mxu0 0.0
    %170 = vmatpush1.msra.mxu0 %v136
    %171 = vmatprep.subr.mxu0 0.0
    %172 = vmatpush1.msra.mxu0 %v137
    %173 = vmatprep.subr.mxu0 0.0
    %174 = vmatpush1.msra.mxu0 %v138
    %175 = vmatprep.subr.mxu0 0.0
    %176 = vmatpush1.msra.mxu0 %v139
    %177 = vmatprep.subr.mxu0 0.0
    %178 = vmatpush1.msra.mxu0 %v140
    %179 = vmatprep.subr.mxu0 0.0
    %180 = vmatpush1.msra.mxu0 %v141
    %181 = vmatprep.subr.mxu0 0.0
    %182 = vmatpush1.msra.mxu0 0.0
    %183 = vmatprep.subr.mxu0 0.0
    %184 = vmatpush1.msra.mxu0 0.0
    %185 = vmatprep.subr.mxu0 0.0
    %186 = vmatpush1.msra.mxu0 0.0
    %187 = vmatprep.subr.mxu0 0.0
    %188 = vmatpush1.msra.mxu0 0.0
    %189 = vmatprep.subr.mxu0 0.0
    %190 = vmatpush1.msra.mxu0 0.0
    %191 = vmatprep.subr.mxu0 0.0
    %192 = vmatpush1.msra.mxu0 0.0
    %193 = vmatprep.subr.mxu0 0.0
    %194 = vmatpush1.msra.mxu0 0.0
    %195 = vmatprep.subr.mxu0 0.0
    %196 = vmatpush1.msra.mxu0 0.0
    %197 = vmatprep.subr.mxu0 0.0
    %198 = vmatpush1.msra.mxu0 0.0
    %199 = vmatprep.subr.mxu0 0.0
    %200 = vmatpush1.msra.mxu0 0.0
    %201 = vmatprep.subr.mxu0 0.0
    %202 = vmatpush1.msra.mxu0 0.0
    %203 = vmatprep.subr.mxu0 0.0
    %204 = vmatpush1.msra.mxu0 0.0
    %205 = vmatprep.subr.mxu0 0.0
    %206 = vmatpush1.msra.mxu0 0.0
    %207 = vmatprep.subr.mxu0 0.0
    %208 = vmatpush1.msra.mxu0 0.0
    %209 = vmatprep.subr.mxu0 0.0
    %210 = vmatpush1.msra.mxu0 0.0
    %211 = vmatprep.subr.mxu0 0.0
    %212 = vmatpush1.msra.mxu0 0.0
    %213 = vmatprep.mubr.f32.mxu0 0.0
    %214 = vmatmul.mubr.f32.gmra.mrb[0].mxu0 %v124
    %v215 = vpop.f32.mrb[0].mxu0
    %v216 = vadd.f32 %v147, %v215
    %v217 = vpop.f32.mrb[0].mxu0
    %218 = vmatprep.mubr.f32.mxu0 0.0
    %219 = vmatmul.mubr.f32.gmra.mrb[0].mxu0 %v125
    %v220 = vpop.f32.mrb[0].mxu0
    %v221 = vadd.f32 %v147, %v220
    %v222 = vpop.f32.mrb[0].mxu0
    %223 = vdwg.mxu0
    %224 = vst.msk [vmem:[#allocation2] sm:$0xff] %vm34, %v216
    %225 = vst.msk [vmem:[#allocation2 + $0x8] sm:$0xff] %vm34, %v221
    // Predicated region
    $region22: #{feed_forward.1} parent=1 // pred_check
      _
    $region23: #{feed_forward.1} parent=1 // pred_check_branch
      %227 = sbr.rel (0) target = $region25
    $region24: #{feed_forward.1} parent=1 // pred_region
      %s229 = ssub.s32 256, 256
      %230 = vsyncadd [#allocation3], %s229
      %s231 = sshll.u32 [#allocation2], 4
      %s232 = int_to_ptr.vmem [resolvable:$true] %s231
      %237 = dma.vmem_to_hbm [thread:$0]  %s232, 256, %s5, [#allocation3], 128, 128, 8
    $region25: #{feed_forward.1} parent=1 // pred_fallthru
      _
    // Predicated region
    $region26: #{feed_forward.1} parent=1 // pred_check
      _
    $region27: #{feed_forward.1} parent=1 // pred_check_branch
      %239 = sbr.rel (0) target = $region29
    $region28: #{feed_forward.1} parent=1 // pred_region
      %240 = dma.done [#allocation3], 256
    $region29: #{feed_forward.1} parent=1 // pred_fallthru
      _
    %241 = vsyncpa [#allocation3], 1

</llo_original>
